<compile_context>
chip_gen: v7x
topology: tpu7x:2x2x1
jax: 0.10.0
libtpu: 0.0.40
codegen_flags: <defaults>
</compile_context>

<pallas_src>
import functools
import math

import jax
import jax.numpy as jnp
from jax.experimental import pallas as pl
from jax.experimental.pallas import tpu as pltpu


def _round_up(x, m):
    return (x + m - 1) // m * m


_ROW_ALIGN = 32  # covers f32 (8,128), bf16 (16,128), int8/fp8 (32,128) tiles


def _packed_offsets(state_dim, action_dim, hidden_dim):
    """Row offsets (32-sublane aligned) of each segment in the packed buffer."""
    h2 = 2 * hidden_dim
    sizes = (("w1s", state_dim), ("w1a", action_dim),
             ("w2", h2), ("w3", h2), ("w4", h2))
    offs, cur = {}, 0
    for name, n in sizes:
        start = _round_up(cur, _ROW_ALIGN)
        offs[name] = start
        cur = start + n
    return offs, _round_up(cur, _ROW_ALIGN)


def pack_qnetwork_params(params, state_dim, action_dim, hidden_dim,
                         dtype=jnp.float32):
    """Fuse + pack the twin-Q weights (once, at init time).

    Returns:
      packed : (rows, 2H) matmul-dtype buffer, 32-sublane-aligned segments:
        w1s : (state_dim, 2H)   [W1_q1 | W1_q2] rows for the state features
        w1a : (action_dim, 2H)  [W1_q1 | W1_q2] rows for the action features
        w2  : (2H, 2H)          block_diag(W2_q1, W2_q2)
        w3  : (2H, 2H)          block_diag(W3_q1, W3_q2)
        w4  : (2H, 2H)          block_diag(W4_q1, W4_q2) zero-padded (lanes 0/1)
      bias   : (4, 2H) float32 (kept in f32 regardless of `dtype`):
        rows = fused b1, b2, b3, b4 (b4 in lanes 0/1)
    """
    h2 = 2 * hidden_dim
    offs, total_rows = _packed_offsets(state_dim, action_dim, hidden_dim)

    def w(q, l):
        return params[q][l][0].astype(jnp.float32)

    def b(q, l):
        return params[q][l][1].reshape(-1).astype(jnp.float32)

    def block_diag(a_, b_):
        out = jnp.zeros((a_.shape[0] + b_.shape[0], a_.shape[1] + b_.shape[1]),
                        jnp.float32)
        out = out.at[:a_.shape[0], :a_.shape[1]].set(a_)
        out = out.at[a_.shape[0]:, a_.shape[1]:].set(b_)
        return out

    w1 = jnp.concatenate([w("q1", "l1"), w("q2", "l1")], axis=1)  # (in_dim, 2H)
    w4_bd = block_diag(w("q1", "l4"), w("q2", "l4"))              # (2H, 2)
    w4 = jnp.zeros((h2, h2), jnp.float32).at[:, :2].set(w4_bd)

    packed = jnp.zeros((total_rows, h2), jnp.float32)
    packed = packed.at[offs["w1s"]:offs["w1s"] + state_dim].set(w1[:state_dim])
    packed = packed.at[offs["w1a"]:offs["w1a"] + action_dim].set(w1[state_dim:])
    packed = packed.at[offs["w2"]:offs["w2"] + h2].set(
        block_diag(w("q1", "l2"), w("q2", "l2")))
    packed = packed.at[offs["w3"]:offs["w3"] + h2].set(
        block_diag(w("q1", "l3"), w("q2", "l3")))
    packed = packed.at[offs["w4"]:offs["w4"] + h2].set(w4)

    bias = jnp.zeros((4, h2), jnp.float32)
    bias = bias.at[0].set(jnp.concatenate([b("q1", "l1"), b("q2", "l1")]))
    bias = bias.at[1].set(jnp.concatenate([b("q1", "l2"), b("q2", "l2")]))
    bias = bias.at[2].set(jnp.concatenate([b("q1", "l3"), b("q2", "l3")]))
    bias = bias.at[3, :2].set(jnp.concatenate([b("q1", "l4"), b("q2", "l4")]))

    return packed.astype(dtype), bias  # bias stays f32


def _qnet_fused_kernel(s_ref, a_ref, w_ref, b_ref, o_ref, *,
                       offs, state_dim, action_dim, h2):
    f32 = jnp.float32
    wdt = w_ref.dtype  # matmul-input dtype (f32 or bf16)

    # Static, 32-row-aligned views of the single resident packed weight buffer.
    w1s = w_ref[pl.ds(offs["w1s"], state_dim), :]
    w1a = w_ref[pl.ds(offs["w1a"], action_dim), :]
    w2 = w_ref[pl.ds(offs["w2"], h2), :]
    w3 = w_ref[pl.ds(offs["w3"], h2), :]
    w4 = w_ref[pl.ds(offs["w4"], h2), :]
    bias = b_ref[...]  # (4, 2H) f32: rows b1, b2, b3, b4 (b4 in lanes 0/1)

    # Layer 1: concat([state, action]) done implicitly via split weights.
    h = (jnp.dot(s_ref[...], w1s, preferred_element_type=f32)
         + jnp.dot(a_ref[...], w1a, preferred_element_type=f32)
         + bias[0:1])
    h = jnp.maximum(h, 0.0)
    # Layers 2/3: block-diagonal fused twin hidden layers (f32 bias/ReLU).
    h = jnp.maximum(
        jnp.dot(h.astype(wdt), w2, preferred_element_type=f32) + bias[1:2], 0.0)
    h = jnp.maximum(
        jnp.dot(h.astype(wdt), w3, preferred_element_type=f32) + bias[2:3], 0.0)
    # Fused head: lanes 0/1 of the matmul result are q1/q2.
    q = jnp.dot(h.astype(wdt), w4, preferred_element_type=f32) + bias[3:4]
    o_ref[...] = q[:, 0:2].astype(o_ref.dtype)  # compact (TB, 2) store


def qnetwork_forward(state, action, packed, bias, hidden_dim, *,
                     batch_tile=256):
    """Twin-Q forward: returns (q1, q2), each (B, 1) float32."""
    B, state_dim = state.shape
    action_dim = action.shape[1]
    h2 = 2 * hidden_dim
    offs, total_rows = _packed_offsets(state_dim, action_dim, hidden_dim)
    assert packed.shape == (total_rows, h2), (packed.shape, (total_rows, h2))
    assert bias.shape == (4, h2) and bias.dtype == jnp.float32

    # Inputs at the matmul dtype (bf16 path: halved input DMA, no in-kernel cast).
    wdt = packed.dtype
    if state.dtype != wdt:
        state = state.astype(wdt)
    if action.dtype != wdt:
        action = action.astype(wdt)

    # Batch tile (multiple of 8 sublanes); pad only when B is not tile-aligned.
    tb = batch_tile if B > batch_tile else max(_round_up(B, 8), 8)
    bp = _round_up(B, tb)
    if bp != B:
        state = jnp.pad(state, ((0, bp - B), (0, 0)))
        action = jnp.pad(action, ((0, bp - B), (0, 0)))

    kernel = functools.partial(
        _qnet_fused_kernel, offs=offs, state_dim=state_dim,
        action_dim=action_dim, h2=h2)

    itemsize = packed.dtype.itemsize
    flops = 2 * bp * ((state_dim + action_dim) * h2 + 3 * h2 * h2)
    bytes_accessed = (packed.size * itemsize + bias.size * 4
                      + (state.size + action.size) * itemsize + bp * 2 * 4)

    out = pl.pallas_call(
        kernel,
        out_shape=jax.ShapeDtypeStruct((bp, 2), jnp.float32),
        grid=(bp // tb,),
        in_specs=[
            pl.BlockSpec((tb, state_dim), lambda i: (i, 0)),
            pl.BlockSpec((tb, action_dim), lambda i: (i, 0)),
            # Weights / f32 biases: constant block index -> one DMA, resident.
            pl.BlockSpec((total_rows, h2), lambda i: (0, 0)),
            pl.BlockSpec((4, h2), lambda i: (0, 0)),
        ],
        out_specs=pl.BlockSpec((tb, 2), lambda i: (i, 0)),
        compiler_params=pltpu.CompilerParams(
            dimension_semantics=("parallel",)),
        cost_estimate=pl.CostEstimate(
            flops=flops, transcendentals=0, bytes_accessed=bytes_accessed),
    )(state, action, packed, bias)

    return out[:B, 0:1], out[:B, 1:2]


def _xavier_uniform(key, in_f, out_f):
    # torch.nn.init.xavier_uniform_ (gain=1) on nn.Linear weight (out_f, in_f);
    # stored transposed (in_f, out_f) so the kernel computes x @ W.
    limit = math.sqrt(6.0 / (in_f + out_f))
    return jax.random.uniform(
        key, (in_f, out_f), minval=-limit, maxval=limit, dtype=jnp.float32)


def init_qnetwork_params(key, state_dim, action_dim, hidden_dim):
    in_dim = state_dim + action_dim
    dims = [(in_dim, hidden_dim), (hidden_dim, hidden_dim),
            (hidden_dim, hidden_dim), (hidden_dim, 1)]
    params = {}
    keys = jax.random.split(key, 8)
    k = 0
    for q in ("q1", "q2"):
        params[q] = {}
        for layer, (din, dout) in zip(("l1", "l2", "l3", "l4"), dims):
            w = _xavier_uniform(keys[k], din, dout)
            b = jnp.zeros((1, dout), dtype=jnp.float32)  # constant_(bias, 0)
            params[q][layer] = (w, b)
            k += 1
    return params


if __name__ == "__main__":
    key = jax.random.PRNGKey(0)
    k_state, k_action, k_params, k_bias, k_sbig, k_abig = jax.random.split(key, 6)

    batch, state_dim, action_dim, hidden_dim = 8, 12, 4, 32

    state = jax.random.normal(k_state, (batch, state_dim), dtype=jnp.float32)
    action = jax.random.normal(k_action, (batch, action_dim), dtype=jnp.float32)
    params = init_qnetwork_params(k_params, state_dim, action_dim, hidden_dim)

    # Pure-JAX reference (matches the PyTorch module semantics).
    def ref_mlp(x, p):
        for layer in ("l1", "l2", "l3"):
            w, b_ = p[layer]
            x = jnp.maximum(x @ w + b_, 0.0)
        w, b_ = p["l4"]
        return x @ w + b_

    def ref_forward(s, a, p):
        x = jnp.concatenate([s, a], axis=1)
        return ref_mlp(x, p["q1"]), ref_mlp(x, p["q2"])

    r1, r2 = ref_forward(state, action, params)

    # ---- f32 weight path (exact check, small batch, single tile) ----
    packed_f32, bias_f32 = pack_qnetwork_params(
        params, state_dim, action_dim, hidden_dim, dtype=jnp.float32)
    q1, q2 = qnetwork_forward(state, action, packed_f32, bias_f32, hidden_dim)
    jax.block_until_ready((q1, q2))
    assert q1.shape == (batch, 1) and q2.shape == (batch, 1)
    assert jnp.allclose(q1, r1, atol=1e-5), float(jnp.max(jnp.abs(q1 - r1)))
    assert jnp.allclose(q2, r2, atol=1e-5), float(jnp.max(jnp.abs(q2 - r2)))

    # ---- nonzero-bias variant (exercises the separate always-f32 bias buffer) ----
    bkeys = iter(jax.random.split(k_bias, 8))
    params_b = {
        qh: {layer: (w_, 0.1 * jax.random.normal(next(bkeys), b_.shape,
                                                 dtype=jnp.float32))
             for layer, (w_, b_) in params[qh].items()}
        for qh in ("q1", "q2")}
    pf, bf = pack_qnetwork_params(params_b, state_dim, action_dim, hidden_dim,
                                  dtype=jnp.float32)
    q1n, q2n = qnetwork_forward(state, action, pf, bf, hidden_dim)
    r1n, r2n = ref_forward(state, action, params_b)
    jax.block_until_ready((q1n, q2n))
    assert jnp.allclose(q1n, r1n, atol=1e-5) and jnp.allclose(q2n, r2n, atol=1e-5)

    # ---- bf16 matmul-input path (valid on v5e/v6e/v7x: f32 MXU accumulation,
    #      f32 bias/ReLU on the VPU; inputs passed as bf16 -> halved input DMA) ----
    packed_bf16, _ = pack_qnetwork_params(
        params, state_dim, action_dim, hidden_dim, dtype=jnp.bfloat16)
    q1b, q2b = qnetwork_forward(state.astype(jnp.bfloat16),
                                action.astype(jnp.bfloat16),
                                packed_bf16, bias_f32, hidden_dim)
    jax.block_until_ready((q1b, q2b))
    assert jnp.allclose(q1b, r1, atol=5e-2, rtol=5e-2)
    assert jnp.allclose(q2b, r2, atol=5e-2, rtol=5e-2)

    # ---- multi-tile batch grid (pipelined DMA, resident weights, pad + tail
    #      discard, v7x megacore sharding) ----
    Bbig = 600  # pads to 768 = 3 x 256-row tiles
    sbig = jax.random.normal(k_sbig, (Bbig, state_dim), dtype=jnp.float32)
    abig = jax.random.normal(k_abig, (Bbig, action_dim), dtype=jnp.float32)
    q1L, q2L = qnetwork_forward(sbig, abig, packed_f32, bias_f32, hidden_dim)
    jax.block_until_ready((q1L, q2L))
    rL1, rL2 = ref_forward(sbig, abig, params)
    assert q1L.shape == (Bbig, 1) and q2L.shape == (Bbig, 1)
    assert jnp.allclose(q1L, rL1, atol=1e-4), float(jnp.max(jnp.abs(q1L - rL1)))
    assert jnp.allclose(q2L, rL2, atol=1e-4), float(jnp.max(jnp.abs(q2L - rL2)))

    print("KERNEL_OK")
</pallas_src>

<mosaic_0001>
module attributes {stable_mosaic.version = 11 : i64} {
  func.func @_qnet_fused_kernel(%arg0: i32, %arg1: memref<8x12xf32, #tpu.memory_space<vmem>>, %arg2: memref<8x4xf32, #tpu.memory_space<vmem>>, %arg3: memref<256x64xf32, #tpu.memory_space<vmem>>, %arg4: memref<4x64xf32, #tpu.memory_space<vmem>>, %arg5: memref<8x2xf32, #tpu.memory_space<vmem>>) attributes {dimension_semantics = [#tpu.dimension_semantics<parallel>], iteration_bounds = array<i64: 1>, scalar_prefetch = 0 : i64, scratch_operands = 0 : i64, tpu.core_type = #tpu.core_type<tc>, window_params = [{transform_indices = @transform_0, window_bounds = array<i64: 8, 12>}, {transform_indices = @transform_1, window_bounds = array<i64: 8, 4>}, {pipeline_mode = #tpu.pipeline_mode<synchronous>, transform_indices = @transform_2, window_bounds = array<i64: 256, 64>}, {pipeline_mode = #tpu.pipeline_mode<synchronous>, transform_indices = @transform_3, window_bounds = array<i64: 4, 64>}, {transform_indices = @transform_4, window_bounds = array<i64: 8, 2>}]} {
    %c0 = arith.constant 0 : index
    %c0_0 = arith.constant 0 : index
    %0 = vector.load %arg3[%c0, %c0_0] : memref<256x64xf32, #tpu.memory_space<vmem>>, vector<12x64xf32>
    %c32 = arith.constant 32 : index
    %c0_1 = arith.constant 0 : index
    %1 = vector.load %arg3[%c32, %c0_1] : memref<256x64xf32, #tpu.memory_space<vmem>>, vector<4x64xf32>
    %c64 = arith.constant 64 : index
    %c0_2 = arith.constant 0 : index
    %2 = vector.load %arg3[%c64, %c0_2] : memref<256x64xf32, #tpu.memory_space<vmem>>, vector<64x64xf32>
    %c128 = arith.constant 128 : index
    %c0_3 = arith.constant 0 : index
    %3 = vector.load %arg3[%c128, %c0_3] : memref<256x64xf32, #tpu.memory_space<vmem>>, vector<64x64xf32>
    %c192 = arith.constant 192 : index
    %c0_4 = arith.constant 0 : index
    %4 = vector.load %arg3[%c192, %c0_4] : memref<256x64xf32, #tpu.memory_space<vmem>>, vector<64x64xf32>
    %c0_5 = arith.constant 0 : index
    %c0_6 = arith.constant 0 : index
    %5 = vector.load %arg4[%c0_5, %c0_6] : memref<4x64xf32, #tpu.memory_space<vmem>>, vector<4x64xf32>
    %c0_7 = arith.constant 0 : index
    %c0_8 = arith.constant 0 : index
    %6 = vector.load %arg1[%c0_7, %c0_8] : memref<8x12xf32, #tpu.memory_space<vmem>>, vector<8x12xf32>
    %cst = arith.constant dense<0.000000e+00> : vector<8x64xf32>
    %7 = tpu.matmul %6, %0, %cst {dimension_numbers = #tpu.dot_dimension_numbers<[1], [0], [0], [1], [0, 0, 1, 1], [], []>} : vector<8x12xf32>, vector<12x64xf32>, vector<8x64xf32> -> vector<8x64xf32>
    %c0_9 = arith.constant 0 : index
    %c0_10 = arith.constant 0 : index
    %8 = vector.load %arg2[%c0_9, %c0_10] : memref<8x4xf32, #tpu.memory_space<vmem>>, vector<8x4xf32>
    %cst_11 = arith.constant dense<0.000000e+00> : vector<8x64xf32>
    %9 = tpu.matmul %8, %1, %cst_11 {dimension_numbers = #tpu.dot_dimension_numbers<[1], [0], [0], [1], [0, 0, 1, 1], [], []>} : vector<8x4xf32>, vector<4x64xf32>, vector<8x64xf32> -> vector<8x64xf32>
    %10 = arith.addf %7, %9 : vector<8x64xf32>
    %11 = vector.extract_strided_slice %5 {offsets = [0, 0], sizes = [1, 64], strides = [1, 1]} : vector<4x64xf32> to vector<1x64xf32>
    %12 = vector.broadcast %11 : vector<1x64xf32> to vector<8x64xf32>
    %13 = arith.addf %10, %12 : vector<8x64xf32>
    %cst_12 = arith.constant 0.000000e+00 : f32
    %14 = vector.broadcast %cst_12 : f32 to vector<8x64xf32>
    %15 = arith.maximumf %13, %14 : vector<8x64xf32>
    %cst_13 = arith.constant dense<0.000000e+00> : vector<8x64xf32>
    %16 = tpu.matmul %15, %2, %cst_13 {dimension_numbers = #tpu.dot_dimension_numbers<[1], [0], [0], [1], [0, 0, 1, 1], [], []>} : vector<8x64xf32>, vector<64x64xf32>, vector<8x64xf32> -> vector<8x64xf32>
    %17 = vector.extract_strided_slice %5 {offsets = [1, 0], sizes = [1, 64], strides = [1, 1]} : vector<4x64xf32> to vector<1x64xf32>
    %18 = vector.broadcast %17 : vector<1x64xf32> to vector<8x64xf32>
    %19 = arith.addf %16, %18 : vector<8x64xf32>
    %cst_14 = arith.constant 0.000000e+00 : f32
    %20 = vector.broadcast %cst_14 : f32 to vector<8x64xf32>
    %21 = arith.maximumf %19, %20 : vector<8x64xf32>
    %cst_15 = arith.constant dense<0.000000e+00> : vector<8x64xf32>
    %22 = tpu.matmul %21, %3, %cst_15 {dimension_numbers = #tpu.dot_dimension_numbers<[1], [0], [0], [1], [0, 0, 1, 1], [], []>} : vector<8x64xf32>, vector<64x64xf32>, vector<8x64xf32> -> vector<8x64xf32>
    %23 = vector.extract_strided_slice %5 {offsets = [2, 0], sizes = [1, 64], strides = [1, 1]} : vector<4x64xf32> to vector<1x64xf32>
    %24 = vector.broadcast %23 : vector<1x64xf32> to vector<8x64xf32>
    %25 = arith.addf %22, %24 : vector<8x64xf32>
    %cst_16 = arith.constant 0.000000e+00 : f32
    %26 = vector.broadcast %cst_16 : f32 to vector<8x64xf32>
    %27 = arith.maximumf %25, %26 : vector<8x64xf32>
    %cst_17 = arith.constant dense<0.000000e+00> : vector<8x64xf32>
    %28 = tpu.matmul %27, %4, %cst_17 {dimension_numbers = #tpu.dot_dimension_numbers<[1], [0], [0], [1], [0, 0, 1, 1], [], []>} : vector<8x64xf32>, vector<64x64xf32>, vector<8x64xf32> -> vector<8x64xf32>
    %29 = vector.extract_strided_slice %5 {offsets = [3, 0], sizes = [1, 64], strides = [1, 1]} : vector<4x64xf32> to vector<1x64xf32>
    %30 = vector.broadcast %29 : vector<1x64xf32> to vector<8x64xf32>
    %31 = arith.addf %28, %30 : vector<8x64xf32>
    %32 = vector.extract_strided_slice %31 {offsets = [0, 0], sizes = [8, 2], strides = [1, 1]} : vector<8x64xf32> to vector<8x2xf32>
    %c0_18 = arith.constant 0 : index
    %c0_19 = arith.constant 0 : index
    %33 = vector.load %arg5[%c0_18, %c0_19] : memref<8x2xf32, #tpu.memory_space<vmem>>, vector<8x2xf32>
    tpu.vector_store %arg5[%c0_18, %c0_19], %32 {strides = array<i32>} : memref<8x2xf32, #tpu.memory_space<vmem>>, vector<8x2xf32>,
    return
  }
  func.func @transform_0(%arg0: i32) -> (i32, i32) {
    %c0_i32 = arith.constant 0 : i32
    %c0_i32_0 = arith.constant 0 : i32
    return %arg0, %c0_i32 : i32, i32
  }
  func.func @transform_1(%arg0: i32) -> (i32, i32) {
    %c0_i32 = arith.constant 0 : i32
    %c0_i32_0 = arith.constant 0 : i32
    return %arg0, %c0_i32 : i32, i32
  }
  func.func @transform_2(%arg0: i32) -> (i32, i32) {
    %c0_i32 = arith.constant 0 : i32
    %c0_i32_0 = arith.constant 0 : i32
    %c0_i32_1 = arith.constant 0 : i32
    return %c0_i32, %c0_i32_0 : i32, i32
  }
  func.func @transform_3(%arg0: i32) -> (i32, i32) {
    %c0_i32 = arith.constant 0 : i32
    %c0_i32_0 = arith.constant 0 : i32
    %c0_i32_1 = arith.constant 0 : i32
    return %c0_i32, %c0_i32_0 : i32, i32
  }
  func.func @transform_4(%arg0: i32) -> (i32, i32) {
    %c0_i32 = arith.constant 0 : i32
    %c0_i32_0 = arith.constant 0 : i32
    return %arg0, %c0_i32 : i32, i32
  }
}

</mosaic_0001>

<llo_original>
// kernel: tpu_custom_call.1
$region0: #{tpu_custom_call.1}
  #allocation0 [shape = 'u32[]', space=smem, size = 0x4, offset = 0x4, fixed_abs, tag = 'smem constant byte address 0x4 - core index']
  #allocation1 [shape = 'u32[144,128]{1,0:T(1,128)}', space=vmem, size = 0x12000, scoped, tag = 'internal scratch']
  %s0 = inlined_call_operand.vmem [shape: f32[8,12], index: 0, kind: input, shape index: {}]
  %s1 = inlined_call_operand.vmem [shape: f32[8,4], index: 1, kind: input, shape index: {}]
  %s2 = inlined_call_operand.vmem [shape: f32[256,64], index: 2, kind: input, shape index: {}]
  %s3 = inlined_call_operand.vmem [shape: f32[4,64], index: 3, kind: input, shape index: {}]
  %s4 = inlined_call_operand.vmem [shape: f32[8,2], index: 4, kind: output, shape index: {}]
  %s5 = sld [smem:[#allocation0]]
  $region26: #{tpu_custom_call.1} parent=0
    _
  %s7 = ssub.s32 1, %s5
  %s8 = scalar_select 0, %s7, %s5
  // Predicated region
  $region2: #{tpu_custom_call.1} parent=0 // pred_check
    _
  $region3: #{tpu_custom_call.1} parent=0 // pred_check_branch
    %10 = sbr.rel (0) target = $region5
  $region4: #{tpu_custom_call.1} parent=0 // pred_region
    _
  $region5: #{tpu_custom_call.1} parent=0 // pred_fallthru
    _
  // Predicated region
  $region6: #{tpu_custom_call.1} parent=0 // pred_check
    _
  $region7: #{tpu_custom_call.1} parent=0 // pred_check_branch
    %12 = sbr.rel (0) target = $region9
  $region8: #{tpu_custom_call.1} parent=0 // pred_region
    _
  $region9: #{tpu_custom_call.1} parent=0 // pred_fallthru
    _
  // Predicated region
  $region10: #{tpu_custom_call.1} parent=0 // pred_check
    _
  $region11: #{tpu_custom_call.1} parent=0 // pred_check_branch
    %14 = sbr.rel (0) target = $region13
  $region12: #{tpu_custom_call.1} parent=0 // pred_region
    _
  $region13: #{tpu_custom_call.1} parent=0 // pred_fallthru
    _
  // Predicated region
  $region14: #{tpu_custom_call.1} parent=0 // pred_check
    _
  $region15: #{tpu_custom_call.1} parent=0 // pred_check_branch
    %16 = sbr.rel (0) target = $region17
  $region16: #{tpu_custom_call.1} parent=0 // pred_region
    _
  $region17: #{tpu_custom_call.1} parent=0 // pred_fallthru
    _
  %v17 = vld [vmem:[%s2] sm:$0xff]
  %v18 = vld [vmem:[%s2 + $0x8] sm:$0xf]
  %v19 = vld [vmem:[%s2 + $0x20] sm:$0xf]
  %v20 = vld [vmem:[%s2 + $0x40] sm:$0xff]
  %v21 = vld [vmem:[%s2 + $0x48] sm:$0xff]
  %v22 = vld [vmem:[%s2 + $0x50] sm:$0xff]
  %v23 = vld [vmem:[%s2 + $0x58] sm:$0xff]
  %v24 = vld [vmem:[%s2 + $0x60] sm:$0xff]
  %v25 = vld [vmem:[%s2 + $0x68] sm:$0xff]
  %v26 = vld [vmem:[%s2 + $0x70] sm:$0xff]
  %v27 = vld [vmem:[%s2 + $0x78] sm:$0xff]
  %v28 = vld [vmem:[%s2 + $0x80] sm:$0xff]
  %v29 = vld [vmem:[%s2 + $0x88] sm:$0xff]
  %v30 = vld [vmem:[%s2 + $0x90] sm:$0xff]
  %v31 = vld [vmem:[%s2 + $0x98] sm:$0xff]
  %v32 = vld [vmem:[%s2 + $0xa0] sm:$0xff]
  %v33 = vld [vmem:[%s2 + $0xa8] sm:$0xff]
  %v34 = vld [vmem:[%s2 + $0xb0] sm:$0xff]
  %v35 = vld [vmem:[%s2 + $0xb8] sm:$0xff]
  %v36 = vld [vmem:[%s2 + $0xc0] sm:$0xff]
  %v37 = vld [vmem:[%s2 + $0xc8] sm:$0xff]
  %v38 = vld [vmem:[%s2 + $0xd0] sm:$0xff]
  %v39 = vld [vmem:[%s2 + $0xd8] sm:$0xff]
  %v40 = vld [vmem:[%s2 + $0xe0] sm:$0xff]
  %v41 = vld [vmem:[%s2 + $0xe8] sm:$0xff]
  %v42 = vld [vmem:[%s2 + $0xf0] sm:$0xff]
  %v43 = vld [vmem:[%s2 + $0xf8] sm:$0xff]
  %v44 = vld [vmem:[%s3] sm:$0xf]
  %v45 = vld [vmem:[%s0] sm:$0xff]
  %v46 = vld [vmem:[%s1] sm:$0xff]
  %vm47 = vcmask 31744
  %v49 = vsel %vm47, %v46, 0
  %vm51 = vcmask 1043456
  %v53 = vsel %vm51, %v19, 0
  %55 = vmatprep.subr.mxu0 0.0
  %56 = vmatpush1.msra.mxu0 %v53
  %57 = vmatprep.subr.mxu0 0.0
  %58 = vmatpush1.msra.mxu0 0.0
  %59 = vmatprep.subr.mxu0 0.0
  %60 = vmatpush1.msra.mxu0 0.0
  %61 = vmatprep.subr.mxu0 0.0
  %62 = vmatpush1.msra.mxu0 0.0
  %63 = vmatprep.subr.mxu0 0.0
  %64 = vmatpush1.msra.mxu0 0.0
  %65 = vmatprep.subr.mxu0 0.0
  %66 = vmatpush1.msra.mxu0 0.0
  %67 = vmatprep.subr.mxu0 0.0
  %68 = vmatpush1.msra.mxu0 0.0
  %69 = vmatprep.subr.mxu0 0.0
  %70 = vmatpush1.msra.mxu0 0.0
  %71 = vmatprep.subr.mxu0 0.0
  %72 = vmatpush1.msra.mxu0 0.0
  %73 = vmatprep.subr.mxu0 0.0
  %74 = vmatpush1.msra.mxu0 0.0
  %75 = vmatprep.subr.mxu0 0.0
  %76 = vmatpush1.msra.mxu0 0.0
  %77 = vmatprep.subr.mxu0 0.0
  %78 = vmatpush1.msra.mxu0 0.0
  %79 = vmatprep.subr.mxu0 0.0
  %80 = vmatpush1.msra.mxu0 0.0
  %81 = vmatprep.subr.mxu0 0.0
  %82 = vmatpush1.msra.mxu0 0.0
  %83 = vmatprep.subr.mxu0 0.0
  %84 = vmatpush1.msra.mxu0 0.0
  %85 = vmatprep.subr.mxu0 0.0
  %86 = vmatpush1.msra.mxu0 0.0
  %87 = vmatprep.subr.mxu0 0.0
  %88 = vmatpush1.msra.mxu0 0.0
  %89 = vmatprep.subr.mxu0 0.0
  %90 = vmatpush1.msra.mxu0 0.0
  %91 = vmatprep.subr.mxu0 0.0
  %92 = vmatpush1.msra.mxu0 0.0
  %93 = vmatprep.subr.mxu0 0.0
  %94 = vmatpush1.msra.mxu0 0.0
  %95 = vmatprep.subr.mxu0 0.0
  %96 = vmatpush1.msra.mxu0 0.0
  %97 = vmatprep.subr.mxu0 0.0
  %98 = vmatpush1.msra.mxu0 0.0
  %99 = vmatprep.subr.mxu0 0.0
  %100 = vmatpush1.msra.mxu0 0.0
  %101 = vmatprep.subr.mxu0 0.0
  %102 = vmatpush1.msra.mxu0 0.0
  %103 = vmatprep.subr.mxu0 0.0
  %104 = vmatpush1.msra.mxu0 0.0
  %105 = vmatprep.subr.mxu0 0.0
  %106 = vmatpush1.msra.mxu0 0.0
  %107 = vmatprep.subr.mxu0 0.0
  %108 = vmatpush1.msra.mxu0 0.0
  %109 = vmatprep.subr.mxu0 0.0
  %110 = vmatpush1.msra.mxu0 0.0
  %111 = vmatprep.subr.mxu0 0.0
  %112 = vmatpush1.msra.mxu0 0.0
  %113 = vmatprep.subr.mxu0 0.0
  %114 = vmatpush1.msra.mxu0 0.0
  %115 = vmatprep.subr.mxu0 0.0
  %116 = vmatpush1.msra.mxu0 0.0
  %117 = vmatprep.subr.mxu0 0.0
  %118 = vmatpush1.msra.mxu0 0.0
  %119 = vmatprep.mubr.f32.mxu0 0.0
  %120 = vmatmul.mubr.f32.gmra.mrb[0].mxu0 %v49
  %v121 = vpop.f32.mrb[0].mxu0
  %v122 = vadd.f32 0.0, %v121
  %v123 = vpop.f32.mrb[0].mxu0
  %124 = vdwg.mxu0
  %vm125 = vcmask 97280
  %v127 = vsel %vm125, %v45, 0
  %v130 = vsel %vm51, %v18, 0
  %132 = vmatprep.subr.mxu0 0.0
  %133 = vmatpush1.msra.mxu0 %v17
  %134 = vmatprep.subr.mxu0 0.0
  %135 = vmatpush1.msra.mxu0 %v130
  %136 = vmatprep.subr.mxu0 0.0
  %137 = vmatpush1.msra.mxu0 0.0
  %138 = vmatprep.subr.mxu0 0.0
  %139 = vmatpush1.msra.mxu0 0.0
  %140 = vmatprep.subr.mxu0 0.0
  %141 = vmatpush1.msra.mxu0 0.0
  %142 = vmatprep.subr.mxu0 0.0
  %143 = vmatpush1.msra.mxu0 0.0
  %144 = vmatprep.subr.mxu0 0.0
  %145 = vmatpush1.msra.mxu0 0.0
  %146 = vmatprep.subr.mxu0 0.0
  %147 = vmatpush1.msra.mxu0 0.0
  %148 = vmatprep.subr.mxu0 0.0
  %149 = vmatpush1.msra.mxu0 0.0
  %150 = vmatprep.subr.mxu0 0.0
  %151 = vmatpush1.msra.mxu0 0.0
  %152 = vmatprep.subr.mxu0 0.0
  %153 = vmatpush1.msra.mxu0 0.0
  %154 = vmatprep.subr.mxu0 0.0
  %155 = vmatpush1.msra.mxu0 0.0
  %156 = vmatprep.subr.mxu0 0.0
  %157 = vmatpush1.msra.mxu0 0.0
  %158 = vmatprep.subr.mxu0 0.0
  %159 = vmatpush1.msra.mxu0 0.0
  %160 = vmatprep.subr.mxu0 0.0
  %161 = vmatpush1.msra.mxu0 0.0
  %162 = vmatprep.subr.mxu0 0.0
  %163 = vmatpush1.msra.mxu0 0.0
  %164 = vmatprep.subr.mxu0 0.0
  %165 = vmatpush1.msra.mxu0 0.0
  %166 = vmatprep.subr.mxu0 0.0
  %167 = vmatpush1.msra.mxu0 0.0
  %168 = vmatprep.subr.mxu0 0.0
  %169 = vmatpush1.msra.mxu0 0.0
  %170 = vmatprep.subr.mxu0 0.0
  %171 = vmatpush1.msra.mxu0 0.0
  %172 = vmatprep.subr.mxu0 0.0
  %173 = vmatpush1.msra.mxu0 0.0
  %174 = vmatprep.subr.mxu0 0.0
  %175 = vmatpush1.msra.mxu0 0.0
  %176 = vmatprep.subr.mxu0 0.0
  %177 = vmatpush1.msra.mxu0 0.0
  %178 = vmatprep.subr.mxu0 0.0
  %179 = vmatpush1.msra.mxu0 0.0
  %180 = vmatprep.subr.mxu0 0.0
  %181 = vmatpush1.msra.mxu0 0.0
  %182 = vmatprep.subr.mxu0 0.0
  %183 = vmatpush1.msra.mxu0 0.0
  %184 = vmatprep.subr.mxu0 0.0
  %185 = vmatpush1.msra.mxu0 0.0
  %186 = vmatprep.subr.mxu0 0.0
  %187 = vmatpush1.msra.mxu0 0.0
  %188 = vmatprep.subr.mxu0 0.0
  %189 = vmatpush1.msra.mxu0 0.0
  %190 = vmatprep.subr.mxu0 0.0
  %191 = vmatpush1.msra.mxu0 0.0
  %192 = vmatprep.subr.mxu0 0.0
  %193 = vmatpush1.msra.mxu0 0.0
  %194 = vmatprep.subr.mxu0 0.0
  %195 = vmatpush1.msra.mxu0 0.0
  %196 = vmatprep.mubr.f32.mxu0 0.0
  %197 = vmatmul.mubr.f32.gmra.mrb[0].mxu0 %v127
  %v198 = vpop.f32.mrb[0].mxu0
  %v199 = vadd.f32 %v122, %v198
  %v200 = vpop.f32.mrb[0].mxu0
  %201 = vdwg.mxu0
  %v202 = vlaneseq
  %v203 = vshrl.u32 %v202, 7
  %v204 = vsub.s32 0, %v203
  %v205 = vrot.slane %v44, %v204
  %v206 = vadd.f32 %v199, %v205
  %v207 = vmax.f32 %v206, 0.0
  %v208 = vlaneseq
  %v209 = vshrl.u32 %v208, 7
  %v210 = vsub.s32 1, %v209
  %v211 = vrot.slane %v44, %v210
  %vm212 = vcmask 523264
  %v214 = vsel %vm212, %v207, 0
  %216 = vmatprep.subr.mxu0 0.0
  %217 = vmatpush1.msra.mxu0 %v20
  %218 = vmatprep.subr.mxu0 0.0
  %219 = vmatpush1.msra.mxu0 %v21
  %220 = vmatprep.subr.mxu0 0.0
  %221 = vmatpush1.msra.mxu0 %v22
  %222 = vmatprep.subr.mxu0 0.0
  %223 = vmatpush1.msra.mxu0 %v23
  %224 = vmatprep.subr.mxu0 0.0
  %225 = vmatpush1.msra.mxu0 %v24
  %226 = vmatprep.subr.mxu0 0.0
  %227 = vmatpush1.msra.mxu0 %v25
  %228 = vmatprep.subr.mxu0 0.0
  %229 = vmatpush1.msra.mxu0 %v26
  %230 = vmatprep.subr.mxu0 0.0
  %231 = vmatpush1.msra.mxu0 %v27
  %232 = vmatprep.subr.mxu0 0.0
  %233 = vmatpush1.msra.mxu0 0.0
  %234 = vmatprep.subr.mxu0 0.0
  %235 = vmatpush1.msra.mxu0 0.0
  %236 = vmatprep.subr.mxu0 0.0
  %237 = vmatpush1.msra.mxu0 0.0
  %238 = vmatprep.subr.mxu0 0.0
  %239 = vmatpush1.msra.mxu0 0.0
  %240 = vmatprep.subr.mxu0 0.0
  %241 = vmatpush1.msra.mxu0 0.0
  %242 = vmatprep.subr.mxu0 0.0
  %243 = vmatpush1.msra.mxu0 0.0
  %244 = vmatprep.subr.mxu0 0.0
  %245 = vmatpush1.msra.mxu0 0.0
  %246 = vmatprep.subr.mxu0 0.0
  %247 = vmatpush1.msra.mxu0 0.0
  %248 = vmatprep.subr.mxu0 0.0
  %249 = vmatpush1.msra.mxu0 0.0
  %250 = vmatprep.subr.mxu0 0.0
  %251 = vmatpush1.msra.mxu0 0.0
  %252 = vmatprep.subr.mxu0 0.0
  %253 = vmatpush1.msra.mxu0 0.0
  %254 = vmatprep.subr.mxu0 0.0
  %255 = vmatpush1.msra.mxu0 0.0
  %256 = vmatprep.subr.mxu0 0.0
  %257 = vmatpush1.msra.mxu0 0.0
  %258 = vmatprep.subr.mxu0 0.0
  %259 = vmatpush1.msra.mxu0 0.0
  %260 = vmatprep.subr.mxu0 0.0
  %261 = vmatpush1.msra.mxu0 0.0
  %262 = vmatprep.subr.mxu0 0.0
  %263 = vmatpush1.msra.mxu0 0.0
  %264 = vmatprep.subr.mxu0 0.0
  %265 = vmatpush1.msra.mxu0 0.0
  %266 = vmatprep.subr.mxu0 0.0
  %267 = vmatpush1.msra.mxu0 0.0
  %268 = vmatprep.subr.mxu0 0.0
  %269 = vmatpush1.msra.mxu0 0.0
  %270 = vmatprep.subr.mxu0 0.0
  %271 = vmatpush1.msra.mxu0 0.0
  %272 = vmatprep.subr.mxu0 0.0
  %273 = vmatpush1.msra.mxu0 0.0
  %274 = vmatprep.subr.mxu0 0.0
  %275 = vmatpush1.msra.mxu0 0.0
  %276 = vmatprep.subr.mxu0 0.0
  %277 = vmatpush1.msra.mxu0 0.0
  %278 = vmatprep.subr.mxu0 0.0
  %279 = vmatpush1.msra.mxu0 0.0
  %280 = vmatprep.mubr.f32.mxu0 0.0
  %281 = vmatmul.mubr.f32.gmra.mrb[0].mxu0 %v214
  %v282 = vpop.f32.mrb[0].mxu0
  %v283 = vadd.f32 %v211, %v282
  %v284 = vpop.f32.mrb[0].mxu0
  %285 = vdwg.mxu0
  %v286 = vmax.f32 %v283, 0.0
  %v287 = vlaneseq
  %v288 = vshrl.u32 %v287, 7
  %v289 = vsub.s32 2, %v288
  %v290 = vrot.slane %v44, %v289
  %v292 = vsel %vm212, %v286, 0
  %294 = vmatprep.subr.mxu0 0.0
  %295 = vmatpush1.msra.mxu0 %v28
  %296 = vmatprep.subr.mxu0 0.0
  %297 = vmatpush1.msra.mxu0 %v29
  %298 = vmatprep.subr.mxu0 0.0
  %299 = vmatpush1.msra.mxu0 %v30
  %300 = vmatprep.subr.mxu0 0.0
  %301 = vmatpush1.msra.mxu0 %v31
  %302 = vmatprep.subr.mxu0 0.0
  %303 = vmatpush1.msra.mxu0 %v32
  %304 = vmatprep.subr.mxu0 0.0
  %305 = vmatpush1.msra.mxu0 %v33
  %306 = vmatprep.subr.mxu0 0.0
  %307 = vmatpush1.msra.mxu0 %v34
  %308 = vmatprep.subr.mxu0 0.0
  %309 = vmatpush1.msra.mxu0 %v35
  %310 = vmatprep.subr.mxu0 0.0
  %311 = vmatpush1.msra.mxu0 0.0
  %312 = vmatprep.subr.mxu0 0.0
  %313 = vmatpush1.msra.mxu0 0.0
  %314 = vmatprep.subr.mxu0 0.0
  %315 = vmatpush1.msra.mxu0 0.0
  %316 = vmatprep.subr.mxu0 0.0
  %317 = vmatpush1.msra.mxu0 0.0
  %318 = vmatprep.subr.mxu0 0.0
  %319 = vmatpush1.msra.mxu0 0.0
  %320 = vmatprep.subr.mxu0 0.0
  %321 = vmatpush1.msra.mxu0 0.0
  %322 = vmatprep.subr.mxu0 0.0
  %323 = vmatpush1.msra.mxu0 0.0
  %324 = vmatprep.subr.mxu0 0.0
  %325 = vmatpush1.msra.mxu0 0.0
  %326 = vmatprep.subr.mxu0 0.0
  %327 = vmatpush1.msra.mxu0 0.0
  %328 = vmatprep.subr.mxu0 0.0
  %329 = vmatpush1.msra.mxu0 0.0
  %330 = vmatprep.subr.mxu0 0.0
  %331 = vmatpush1.msra.mxu0 0.0
  %332 = vmatprep.subr.mxu0 0.0
  %333 = vmatpush1.msra.mxu0 0.0
  %334 = vmatprep.subr.mxu0 0.0
  %335 = vmatpush1.msra.mxu0 0.0
  %336 = vmatprep.subr.mxu0 0.0
  %337 = vmatpush1.msra.mxu0 0.0
  %338 = vmatprep.subr.mxu0 0.0
  %339 = vmatpush1.msra.mxu0 0.0
  %340 = vmatprep.subr.mxu0 0.0
  %341 = vmatpush1.msra.mxu0 0.0
  %342 = vmatprep.subr.mxu0 0.0
  %343 = vmatpush1.msra.mxu0 0.0
  %344 = vmatprep.subr.mxu0 0.0
  %345 = vmatpush1.msra.mxu0 0.0
  %346 = vmatprep.subr.mxu0 0.0
  %347 = vmatpush1.msra.mxu0 0.0
  %348 = vmatprep.subr.mxu0 0.0
  %349 = vmatpush1.msra.mxu0 0.0
  %350 = vmatprep.subr.mxu0 0.0
  %351 = vmatpush1.msra.mxu0 0.0
  %352 = vmatprep.subr.mxu0 0.0
  %353 = vmatpush1.msra.mxu0 0.0
  %354 = vmatprep.subr.mxu0 0.0
  %355 = vmatpush1.msra.mxu0 0.0
  %356 = vmatprep.subr.mxu0 0.0
  %357 = vmatpush1.msra.mxu0 0.0
  %358 = vmatprep.mubr.f32.mxu0 0.0
  %359 = vmatmul.mubr.f32.gmra.mrb[0].mxu0 %v292
  %v360 = vpop.f32.mrb[0].mxu0
  %v361 = vadd.f32 %v290, %v360
  %v362 = vpop.f32.mrb[0].mxu0
  %363 = vdwg.mxu0
  %v364 = vmax.f32 %v361, 0.0
  %v365 = vlaneseq
  %v366 = vshrl.u32 %v365, 7
  %v367 = vsub.s32 3, %v366
  %v368 = vrot.slane %v44, %v367
  %v370 = vsel %vm212, %v364, 0
  %372 = vmatprep.subr.mxu0 0.0
  %373 = vmatpush1.msra.mxu0 %v36
  %374 = vmatprep.subr.mxu0 0.0
  %375 = vmatpush1.msra.mxu0 %v37
  %376 = vmatprep.subr.mxu0 0.0
  %377 = vmatpush1.msra.mxu0 %v38
  %378 = vmatprep.subr.mxu0 0.0
  %379 = vmatpush1.msra.mxu0 %v39
  %380 = vmatprep.subr.mxu0 0.0
  %381 = vmatpush1.msra.mxu0 %v40
  %382 = vmatprep.subr.mxu0 0.0
  %383 = vmatpush1.msra.mxu0 %v41
  %384 = vmatprep.subr.mxu0 0.0
  %385 = vmatpush1.msra.mxu0 %v42
  %386 = vmatprep.subr.mxu0 0.0
  %387 = vmatpush1.msra.mxu0 %v43
  %388 = vmatprep.subr.mxu0 0.0
  %389 = vmatpush1.msra.mxu0 0.0
  %390 = vmatprep.subr.mxu0 0.0
  %391 = vmatpush1.msra.mxu0 0.0
  %392 = vmatprep.subr.mxu0 0.0
  %393 = vmatpush1.msra.mxu0 0.0
  %394 = vmatprep.subr.mxu0 0.0
  %395 = vmatpush1.msra.mxu0 0.0
  %396 = vmatprep.subr.mxu0 0.0
  %397 = vmatpush1.msra.mxu0 0.0
  %398 = vmatprep.subr.mxu0 0.0
  %399 = vmatpush1.msra.mxu0 0.0
  %400 = vmatprep.subr.mxu0 0.0
  %401 = vmatpush1.msra.mxu0 0.0
  %402 = vmatprep.subr.mxu0 0.0
  %403 = vmatpush1.msra.mxu0 0.0
  %404 = vmatprep.subr.mxu0 0.0
  %405 = vmatpush1.msra.mxu0 0.0
  %406 = vmatprep.subr.mxu0 0.0
  %407 = vmatpush1.msra.mxu0 0.0
  %408 = vmatprep.subr.mxu0 0.0
  %409 = vmatpush1.msra.mxu0 0.0
  %410 = vmatprep.subr.mxu0 0.0
  %411 = vmatpush1.msra.mxu0 0.0
  %412 = vmatprep.subr.mxu0 0.0
  %413 = vmatpush1.msra.mxu0 0.0
  %414 = vmatprep.subr.mxu0 0.0
  %415 = vmatpush1.msra.mxu0 0.0
  %416 = vmatprep.subr.mxu0 0.0
  %417 = vmatpush1.msra.mxu0 0.0
  %418 = vmatprep.subr.mxu0 0.0
  %419 = vmatpush1.msra.mxu0 0.0
  %420 = vmatprep.subr.mxu0 0.0
  %421 = vmatpush1.msra.mxu0 0.0
  %422 = vmatprep.subr.mxu0 0.0
  %423 = vmatpush1.msra.mxu0 0.0
  %424 = vmatprep.subr.mxu0 0.0
  %425 = vmatpush1.msra.mxu0 0.0
  %426 = vmatprep.subr.mxu0 0.0
  %427 = vmatpush1.msra.mxu0 0.0
  %428 = vmatprep.subr.mxu0 0.0
  %429 = vmatpush1.msra.mxu0 0.0
  %430 = vmatprep.subr.mxu0 0.0
  %431 = vmatpush1.msra.mxu0 0.0
  %432 = vmatprep.subr.mxu0 0.0
  %433 = vmatpush1.msra.mxu0 0.0
  %434 = vmatprep.subr.mxu0 0.0
  %435 = vmatpush1.msra.mxu0 0.0
  %436 = vmatprep.mubr.f32.mxu0 0.0
  %437 = vmatmul.mubr.f32.gmra.mrb[0].mxu0 %v370
  %v438 = vpop.f32.mrb[0].mxu0
  %v439 = vadd.f32 %v368, %v438
  %v440 = vpop.f32.mrb[0].mxu0
  %441 = vdwg.mxu0
  %vm442 = vcmask 15360
  %443 = vst.msk [vmem:[%s4] sm:$0xff] %vm442, %v439
  // Predicated region
  $region18: #{tpu_custom_call.1} parent=0 // pred_check
    _
  $region19: #{tpu_custom_call.1} parent=0 // pred_check_branch
    %445 = sbr.rel (0) target = $region21
  $region20: #{tpu_custom_call.1} parent=0 // pred_region
    _
  $region21: #{tpu_custom_call.1} parent=0 // pred_fallthru
    _
  // Predicated region
  $region22: #{tpu_custom_call.1} parent=0 // pred_check
    _
  $region23: #{tpu_custom_call.1} parent=0 // pred_check_branch
    %447 = sbr.rel (0) target = $region25
  $region24: #{tpu_custom_call.1} parent=0 // pred_region
    _
  $region25: #{tpu_custom_call.1} parent=0 // pred_fallthru
    _

</llo_original>
